<compile_context>
chip_gen: v7x
topology: tpu7x:2x2x1
jax: 0.10.0
libtpu: 0.0.40
codegen_flags: <defaults>
</compile_context>

<pallas_src>
import jax
import jax.numpy as jnp
from jax import lax
from jax.experimental import pallas as pl
from jax.experimental.pallas import tpu as pltpu


_SCOPED_VMEM_LIMIT = 32 * 1024 * 1024   # requested scoped VMEM; <= physical on all gens


def _vmem_budget_bytes():
    """Generation-aware budget for the double-buffered x window."""
    try:
        phys = pltpu.get_tpu_info().vmem_capacity_bytes
    except Exception:
        phys = 64 * 1024 * 1024          # assume the smallest current gen (v7x)
    # <= 1/3 of physical VMEM, capped at 24 MiB so weights + scratch + output
    # + Mosaic internals always fit inside the 32 MiB scoped limit requested
    # below (and inside v7x's 64 MiB physical VMEM).
    return int(min(phys // 3, 24 * 1024 * 1024))


def _choose_spatial_tile(C, HW, budget_bytes, dtype_bytes=4):
    """Pick the HW tile width for the x BlockSpec.

    Prefers thw == HW (single clean tile per batch row, fully contiguous DMA,
    no remainder mask).  Otherwise returns the largest multiple of 128 whose
    double-buffered (C, thw) block fits `budget_bytes`.
    """
    full_row = 2 * dtype_bytes * C * HW              # double-buffered full row
    if full_row <= budget_bytes:
        return HW
    per_lane = 2 * dtype_bytes * C
    lanes = (budget_bytes // per_lane) // 128 * 128
    return max(128, int(lanes))


def _make_kernel(HW, THW, inv_hw, needs_mask):
    """Build the channel-attention kernel for static (HW, THW).

    Only Python scalars are closed over (no jnp arrays -> nothing captured).
    """

    def kernel(x_ref, w1_ref, b1_ref, w2_ref, b2_ref, o_ref, sum_sc, max_sc):
        s_idx = pl.program_id(1)
        last = pl.num_programs(1) - 1

        # ---- init running stats at the first HW tile of this batch row ----
        @pl.when(s_idx == 0)
        def _init():
            sum_sc[...] = jnp.zeros_like(sum_sc)
            max_sc[...] = jnp.full_like(max_sc, -jnp.inf)

        # ---- pooling: read the tile once, fold running sum + running max ----
        x = x_ref[0]                                   # (C, THW) f32

        def _accumulate(x_sum, x_max):
            sum_sc[...] = sum_sc[...] + jnp.sum(x_sum, axis=-1, keepdims=True)
            max_sc[...] = jnp.maximum(
                max_sc[...], jnp.max(x_max, axis=-1, keepdims=True))

        if needs_mask:
            # Only the LAST tile is partial: interior tiles take the unmasked
            # fast path (no iota / compare / select, no extra temporaries).
            @pl.when(s_idx != last)
            def _interior():
                _accumulate(x, x)

            @pl.when(s_idx == last)
            def _remainder():
                lane = s_idx * THW + lax.broadcasted_iota(jnp.int32, x.shape, 1)
                valid = lane < HW
                _accumulate(jnp.where(valid, x, 0.0),
                            jnp.where(valid, x, -jnp.inf))
        else:
            _accumulate(x, x)

        # ---- finalize: fused shared-MLP + sigmoid (once per batch row) ----
        @pl.when(s_idx == last)
        def _finalize():
            avg_col = sum_sc[...] * inv_hw             # (C, 1) avg pool
            max_col = max_sc[...]                      # (C, 1) max pool

            # shared MLP on both pooled vectors, column orientation throughout
            # (no cross-lane relayout anywhere).
            h_avg = jnp.maximum(
                jnp.dot(w1_ref[...], avg_col,
                        preferred_element_type=jnp.float32) + b1_ref[...], 0.0)
            h_max = jnp.maximum(
                jnp.dot(w1_ref[...], max_col,
                        preferred_element_type=jnp.float32) + b1_ref[...], 0.0)

            # The second layer is linear, so MLP(avg)+MLP(max)
            #   = W2 @ (h_avg + h_max) + 2*b2.
            s = jnp.dot(w2_ref[...], h_avg + h_max,
                        preferred_element_type=jnp.float32) + 2.0 * b2_ref[...]

            # Exact sigmoid: exp runs on the EUP; the divide happens once per
            # batch row so the approx reciprocal is not worth the error.
            o_ref[0] = 1.0 / (1.0 + jnp.exp(-s))       # (C, 1)

    return kernel


def channel_attention(x, w1, b1, w2, b2, *, spatial_tile=None):
    """Pallas ChannelAttention forward.

    x : (N, C, H, W) f32
    w1: (mid, C), b1: (mid,)   -- first 1x1 conv of the shared MLP
    w2: (C, mid), b2: (C,)     -- second 1x1 conv
    Returns the (N, C, 1, 1) sigmoid attention map, matching PyTorch
    ChannelAttention.forward.
    """
    N, C, H, W = x.shape
    HW = H * W
    mid = w1.shape[0]

    x_flat = x.reshape(N, C, HW)            # metadata-only reshape of NCHW
    w1_m = w1.reshape(mid, C)
    w2_m = w2.reshape(C, mid)
    b1_col = b1.reshape(mid, 1)
    b2_col = b2.reshape(C, 1)

    if spatial_tile is None:
        thw = _choose_spatial_tile(C, HW, _vmem_budget_bytes(),
                                   dtype_bytes=x.dtype.itemsize)
    else:
        thw = min(int(spatial_tile), HW)
        if thw < HW and thw % 128 != 0:
            raise ValueError("spatial_tile must be a multiple of 128 (or >= HW)")

    num_hw_tiles = pl.cdiv(HW, thw)
    needs_mask = (thw < HW) and (HW % thw != 0)

    kernel = _make_kernel(HW, thw, 1.0 / HW, needs_mask)

    # TODO(synk): for batch-1 inference on v7x, add a parallel channel-block
    # grid axis (pooling is channel-independent) and hoist the tiny
    # MLP+sigmoid into the wrapper so both TensorCores share the HBM stream.
    out = pl.pallas_call(
        kernel,
        out_shape=jax.ShapeDtypeStruct((N, C, 1), jnp.float32),
        grid_spec=pltpu.PrefetchScalarGridSpec(
            num_scalar_prefetch=0,
            grid=(N, num_hw_tiles),
            in_specs=[
                pl.BlockSpec((1, C, thw), lambda n, s: (n, 0, s)),   # x tile
                pl.BlockSpec((mid, C), lambda n, s: (0, 0)),         # W1
                pl.BlockSpec((mid, 1), lambda n, s: (0, 0)),         # b1
                pl.BlockSpec((C, mid), lambda n, s: (0, 0)),         # W2
                pl.BlockSpec((C, 1), lambda n, s: (0, 0)),           # b2
            ],
            out_specs=pl.BlockSpec((1, C, 1), lambda n, s: (n, 0, 0)),
            scratch_shapes=[pltpu.VMEM((C, 1), jnp.float32),   # running sum
                            pltpu.VMEM((C, 1), jnp.float32)],  # running max
        ),
        compiler_params=pltpu.CompilerParams(
            dimension_semantics=("parallel", "arbitrary"),
            vmem_limit_bytes=_SCOPED_VMEM_LIMIT),
    )(x_flat, w1_m, b1_col, w2_m, b2_col)

    return out.reshape(N, C, 1, 1)


def reference(x, w1, b1, w2, b2):
    """Pure-JAX reference mirroring the PyTorch forward."""
    avg = jnp.mean(x, axis=(2, 3))                               # (N, C)
    mx = jnp.max(x, axis=(2, 3))                                 # (N, C)

    def mlp(v):
        h = jnp.maximum(v @ w1.T + b1, 0.0)                      # (N, mid)
        return h @ w2.T + b2                                     # (N, C)

    s = mlp(avg) + mlp(mx)
    return jax.nn.sigmoid(s)[:, :, None, None]                   # (N, C, 1, 1)


if __name__ == "__main__":
    key = jax.random.PRNGKey(0)
    # channels=64, reduction=16 -> mid=4; HW=576 (24x24).
    N, C, H, W = 2, 64, 24, 24
    reduction = 16
    mid = C // reduction

    kx, k1, k2, k3, k4 = jax.random.split(key, 5)
    x = jax.random.normal(kx, (N, C, H, W), dtype=jnp.float32)

    # Deterministic parameter init (Conv2d 1x1 weights squeezed to 2-D).
    w1 = jax.random.normal(k1, (mid, C), dtype=jnp.float32) * (1.0 / jnp.sqrt(C))
    b1 = jax.random.normal(k2, (mid,), dtype=jnp.float32) * 0.01
    w2 = jax.random.normal(k3, (C, mid), dtype=jnp.float32) * (1.0 / jnp.sqrt(mid))
    b2 = jax.random.normal(k4, (C,), dtype=jnp.float32) * 0.01

    ref = reference(x, w1, b1, w2, b2)

    # 1) Default path: whole-row tile (thw == HW), single grid step per batch
    #    row, no remainder mask.
    out = jax.block_until_ready(channel_attention(x, w1, b1, w2, b2))
    assert out.shape == (N, C, 1, 1)
    assert jnp.allclose(out, ref, atol=1e-5, rtol=1e-5), "mismatch (full-row tile)"

    # 2) Forced small tile: exercises the tiled spatial reduction and the
    #    pl.when-gated remainder mask (576 = 2*256 + 64).
    out_tiled = jax.block_until_ready(
        channel_attention(x, w1, b1, w2, b2, spatial_tile=256))
    assert jnp.allclose(out_tiled, ref, atol=1e-5, rtol=1e-5), "mismatch (tiled path)"

    print("KERNEL_OK")
</pallas_src>

<mosaic_0001>
module attributes {stable_mosaic.version = 11 : i64} {
  func.func @kernel(%arg0: i32, %arg1: i32, %arg2: memref<1x64x576xf32, #tpu.memory_space<vmem>>, %arg3: memref<4x64xf32, #tpu.memory_space<vmem>>, %arg4: memref<4x1xf32, #tpu.memory_space<vmem>>, %arg5: memref<64x4xf32, #tpu.memory_space<vmem>>, %arg6: memref<64x1xf32, #tpu.memory_space<vmem>>, %arg7: memref<1x64x1xf32, #tpu.memory_space<vmem>>, %arg8: memref<64x1xf32, #tpu.memory_space<vmem>>, %arg9: memref<64x1xf32, #tpu.memory_space<vmem>>) attributes {dimension_semantics = [#tpu.dimension_semantics<parallel>, #tpu.dimension_semantics<arbitrary>], iteration_bounds = array<i64: 2, 1>, scalar_prefetch = 0 : i64, scratch_operands = 2 : i64, tpu.core_type = #tpu.core_type<tc>, window_params = [{transform_indices = @transform_0, window_bounds = array<i64: 1, 64, 576>}, {pipeline_mode = #tpu.pipeline_mode<synchronous>, transform_indices = @transform_1, window_bounds = array<i64: 4, 64>}, {pipeline_mode = #tpu.pipeline_mode<synchronous>, transform_indices = @transform_2, window_bounds = array<i64: 4, 1>}, {pipeline_mode = #tpu.pipeline_mode<synchronous>, transform_indices = @transform_3, window_bounds = array<i64: 64, 4>}, {pipeline_mode = #tpu.pipeline_mode<synchronous>, transform_indices = @transform_4, window_bounds = array<i64: 64, 1>}, {transform_indices = @transform_5, window_bounds = array<i64: 1, 64, 1>}]} {
    %c0_i32 = arith.constant 0 : i32
    %0 = arith.cmpi eq, %arg1, %c0_i32 : i32
    %1 = arith.extui %0 : i1 to i32
    %c0_i32_0 = arith.constant 0 : i32
    %2 = arith.cmpi ne, %1, %c0_i32_0 : i32
    scf.if %2 {
      %cst_14 = arith.constant 0.000000e+00 : f32
      %18 = vector.broadcast %cst_14 : f32 to vector<64x1xf32>
      %c0_15 = arith.constant 0 : index
      %c0_16 = arith.constant 0 : index
      %19 = vector.load %arg8[%c0_15, %c0_16] : memref<64x1xf32, #tpu.memory_space<vmem>>, vector<64x1xf32>
      tpu.vector_store %arg8[%c0_15, %c0_16], %18 {strides = array<i32>} : memref<64x1xf32, #tpu.memory_space<vmem>>, vector<64x1xf32>,
      %cst_17 = arith.constant 0xFF800000 : f32
      %20 = vector.broadcast %cst_17 : f32 to vector<64x1xf32>
      %c0_18 = arith.constant 0 : index
      %c0_19 = arith.constant 0 : index
      %21 = vector.load %arg9[%c0_18, %c0_19] : memref<64x1xf32, #tpu.memory_space<vmem>>, vector<64x1xf32>
      tpu.vector_store %arg9[%c0_18, %c0_19], %20 {strides = array<i32>} : memref<64x1xf32, #tpu.memory_space<vmem>>, vector<64x1xf32>,
    } else {
    }
    %c0 = arith.constant 0 : index
    %c0_1 = arith.constant 0 : index
    %c0_2 = arith.constant 0 : index
    %3 = vector.load %arg2[%c0, %c0_1, %c0_2] : memref<1x64x576xf32, #tpu.memory_space<vmem>>, vector<1x64x576xf32>
    %4 = vector.shape_cast %3 : vector<1x64x576xf32> to vector<64x576xf32>
    %c0_3 = arith.constant 0 : index
    %c0_4 = arith.constant 0 : index
    %5 = vector.load %arg8[%c0_3, %c0_4] : memref<64x1xf32, #tpu.memory_space<vmem>>, vector<64x1xf32>
    %cst = arith.constant dense<0.000000e+00> : vector<64xf32>
    %6 = vector.multi_reduction <add>, %4, %cst [1] : vector<64x576xf32> to vector<64xf32>
    %7 = vector.shape_cast %6 : vector<64xf32> to vector<64x1xf32>
    %8 = arith.addf %5, %7 : vector<64x1xf32>
    %c0_5 = arith.constant 0 : index
    %c0_6 = arith.constant 0 : index
    %9 = vector.load %arg8[%c0_5, %c0_6] : memref<64x1xf32, #tpu.memory_space<vmem>>, vector<64x1xf32>
    tpu.vector_store %arg8[%c0_5, %c0_6], %8 {strides = array<i32>} : memref<64x1xf32, #tpu.memory_space<vmem>>, vector<64x1xf32>,
    %c0_7 = arith.constant 0 : index
    %c0_8 = arith.constant 0 : index
    %10 = vector.load %arg9[%c0_7, %c0_8] : memref<64x1xf32, #tpu.memory_space<vmem>>, vector<64x1xf32>
    %cst_9 = arith.constant dense<0xFF800000> : vector<64xf32>
    %11 = vector.multi_reduction <maximumf>, %4, %cst_9 [1] : vector<64x576xf32> to vector<64xf32>
    %12 = vector.shape_cast %11 : vector<64xf32> to vector<64x1xf32>
    %13 = arith.maximumf %10, %12 : vector<64x1xf32>
    %c0_10 = arith.constant 0 : index
    %c0_11 = arith.constant 0 : index
    %14 = vector.load %arg9[%c0_10, %c0_11] : memref<64x1xf32, #tpu.memory_space<vmem>>, vector<64x1xf32>
    tpu.vector_store %arg9[%c0_10, %c0_11], %13 {strides = array<i32>} : memref<64x1xf32, #tpu.memory_space<vmem>>, vector<64x1xf32>,
    %c0_i32_12 = arith.constant 0 : i32
    %15 = arith.cmpi eq, %arg1, %c0_i32_12 : i32
    %16 = arith.extui %15 : i1 to i32
    %c0_i32_13 = arith.constant 0 : i32
    %17 = arith.cmpi ne, %16, %c0_i32_13 : i32
    scf.if %17 {
      %c0_14 = arith.constant 0 : index
      %c0_15 = arith.constant 0 : index
      %18 = vector.load %arg8[%c0_14, %c0_15] : memref<64x1xf32, #tpu.memory_space<vmem>>, vector<64x1xf32>
      %cst_16 = arith.constant 0.00173611112 : f32
      %19 = vector.broadcast %cst_16 : f32 to vector<64x1xf32>
      %20 = arith.mulf %18, %19 : vector<64x1xf32>
      %c0_17 = arith.constant 0 : index
      %c0_18 = arith.constant 0 : index
      %21 = vector.load %arg9[%c0_17, %c0_18] : memref<64x1xf32, #tpu.memory_space<vmem>>, vector<64x1xf32>
      %c0_19 = arith.constant 0 : index
      %c0_20 = arith.constant 0 : index
      %22 = vector.load %arg3[%c0_19, %c0_20] : memref<4x64xf32, #tpu.memory_space<vmem>>, vector<4x64xf32>
      %cst_21 = arith.constant dense<0.000000e+00> : vector<4x1xf32>
      %23 = tpu.matmul %22, %20, %cst_21 {dimension_numbers = #tpu.dot_dimension_numbers<[1], [0], [0], [1], [0, 0, 1, 1], [], []>} : vector<4x64xf32>, vector<64x1xf32>, vector<4x1xf32> -> vector<4x1xf32>
      %c0_22 = arith.constant 0 : index
      %c0_23 = arith.constant 0 : index
      %24 = vector.load %arg4[%c0_22, %c0_23] : memref<4x1xf32, #tpu.memory_space<vmem>>, vector<4x1xf32>
      %25 = arith.addf %23, %24 : vector<4x1xf32>
      %cst_24 = arith.constant 0.000000e+00 : f32
      %26 = vector.broadcast %cst_24 : f32 to vector<4x1xf32>
      %27 = arith.maximumf %25, %26 : vector<4x1xf32>
      %c0_25 = arith.constant 0 : index
      %c0_26 = arith.constant 0 : index
      %28 = vector.load %arg3[%c0_25, %c0_26] : memref<4x64xf32, #tpu.memory_space<vmem>>, vector<4x64xf32>
      %cst_27 = arith.constant dense<0.000000e+00> : vector<4x1xf32>
      %29 = tpu.matmul %28, %21, %cst_27 {dimension_numbers = #tpu.dot_dimension_numbers<[1], [0], [0], [1], [0, 0, 1, 1], [], []>} : vector<4x64xf32>, vector<64x1xf32>, vector<4x1xf32> -> vector<4x1xf32>
      %c0_28 = arith.constant 0 : index
      %c0_29 = arith.constant 0 : index
      %30 = vector.load %arg4[%c0_28, %c0_29] : memref<4x1xf32, #tpu.memory_space<vmem>>, vector<4x1xf32>
      %31 = arith.addf %29, %30 : vector<4x1xf32>
      %cst_30 = arith.constant 0.000000e+00 : f32
      %32 = vector.broadcast %cst_30 : f32 to vector<4x1xf32>
      %33 = arith.maximumf %31, %32 : vector<4x1xf32>
      %c0_31 = arith.constant 0 : index
      %c0_32 = arith.constant 0 : index
      %34 = vector.load %arg5[%c0_31, %c0_32] : memref<64x4xf32, #tpu.memory_space<vmem>>, vector<64x4xf32>
      %35 = arith.addf %27, %33 : vector<4x1xf32>
      %cst_33 = arith.constant dense<0.000000e+00> : vector<64x1xf32>
      %36 = tpu.matmul %34, %35, %cst_33 {dimension_numbers = #tpu.dot_dimension_numbers<[1], [0], [0], [1], [0, 0, 1, 1], [], []>} : vector<64x4xf32>, vector<4x1xf32>, vector<64x1xf32> -> vector<64x1xf32>
      %c0_34 = arith.constant 0 : index
      %c0_35 = arith.constant 0 : index
      %37 = vector.load %arg6[%c0_34, %c0_35] : memref<64x1xf32, #tpu.memory_space<vmem>>, vector<64x1xf32>
      %cst_36 = arith.constant 2.000000e+00 : f32
      %38 = vector.broadcast %cst_36 : f32 to vector<64x1xf32>
      %39 = arith.mulf %38, %37 : vector<64x1xf32>
      %40 = arith.addf %36, %39 : vector<64x1xf32>
      %cst_37 = arith.constant 0.000000e+00 : f32
      %41 = vector.broadcast %cst_37 : f32 to vector<64x1xf32>
      %42 = arith.subf %41, %40 : vector<64x1xf32>
      %43 = math.exp %42 : vector<64x1xf32>
      %cst_38 = arith.constant 1.000000e+00 : f32
      %44 = vector.broadcast %cst_38 : f32 to vector<64x1xf32>
      %45 = arith.addf %44, %43 : vector<64x1xf32>
      %cst_39 = arith.constant 1.000000e+00 : f32
      %46 = vector.broadcast %cst_39 : f32 to vector<64x1xf32>
      %47 = arith.divf %46, %45 : vector<64x1xf32>
      %c0_40 = arith.constant 0 : index
      %c0_41 = arith.constant 0 : index
      %c0_42 = arith.constant 0 : index
      %48 = vector.load %arg7[%c0_40, %c0_41, %c0_42] : memref<1x64x1xf32, #tpu.memory_space<vmem>>, vector<1x64x1xf32>
      %49 = vector.shape_cast %48 : vector<1x64x1xf32> to vector<64x1xf32>
      %50 = vector.shape_cast %47 : vector<64x1xf32> to vector<1x64x1xf32>
      tpu.vector_store %arg7[%c0_40, %c0_41, %c0_42], %50 {strides = array<i32>} : memref<1x64x1xf32, #tpu.memory_space<vmem>>, vector<1x64x1xf32>,
    } else {
    }
    return
  }
  func.func @transform_0(%arg0: i32, %arg1: i32) -> (i32, i32, i32) {
    %c0_i32 = arith.constant 0 : i32
    %c0_i32_0 = arith.constant 0 : i32
    return %arg0, %c0_i32, %arg1 : i32, i32, i32
  }
  func.func @transform_1(%arg0: i32, %arg1: i32) -> (i32, i32) {
    %c0_i32 = arith.constant 0 : i32
    %c0_i32_0 = arith.constant 0 : i32
    %c0_i32_1 = arith.constant 0 : i32
    return %c0_i32, %c0_i32_0 : i32, i32
  }
  func.func @transform_2(%arg0: i32, %arg1: i32) -> (i32, i32) {
    %c0_i32 = arith.constant 0 : i32
    %c0_i32_0 = arith.constant 0 : i32
    %c0_i32_1 = arith.constant 0 : i32
    return %c0_i32, %c0_i32_0 : i32, i32
  }
  func.func @transform_3(%arg0: i32, %arg1: i32) -> (i32, i32) {
    %c0_i32 = arith.constant 0 : i32
    %c0_i32_0 = arith.constant 0 : i32
    %c0_i32_1 = arith.constant 0 : i32
    return %c0_i32, %c0_i32_0 : i32, i32
  }
  func.func @transform_4(%arg0: i32, %arg1: i32) -> (i32, i32) {
    %c0_i32 = arith.constant 0 : i32
    %c0_i32_0 = arith.constant 0 : i32
    %c0_i32_1 = arith.constant 0 : i32
    return %c0_i32, %c0_i32_0 : i32, i32
  }
  func.func @transform_5(%arg0: i32, %arg1: i32) -> (i32, i32, i32) {
    %c0_i32 = arith.constant 0 : i32
    %c0_i32_0 = arith.constant 0 : i32
    %c0_i32_1 = arith.constant 0 : i32
    return %arg0, %c0_i32, %c0_i32_0 : i32, i32, i32
  }
}

</mosaic_0001>

<llo_original>
// kernel: tpu_custom_call.1
$region0: #{tpu_custom_call.1}
  #allocation0 [shape = 'u32[]', space=smem, size = 0x4, offset = 0x4, fixed_abs, tag = 'smem constant byte address 0x4 - core index']
  #allocation1 [shape = 'u32[144,128]{1,0:T(1,128)}', space=vmem, size = 0x12000, scoped, tag = 'internal scratch']
  #allocation2 [shape = 'f32[64,1]{1,0:T(8,128)}', space=vmem, size = 0x8000, scoped, tag = 'scratch operand']
  #allocation3 [shape = 'f32[64,1]{1,0:T(8,128)}', space=vmem, size = 0x8000, scoped, tag = 'scratch operand']
  %s0 = inlined_call_operand.hbm [shape: f32[2,64,576], index: 0, kind: input, shape index: {}]
  %s1 = inlined_call_operand.vmem [shape: f32[4,64], index: 1, kind: input, shape index: {}]
  %s2 = inlined_call_operand.vmem [shape: f32[4,1], index: 2, kind: input, shape index: {}]
  %s3 = inlined_call_operand.vmem [shape: f32[64,4], index: 3, kind: input, shape index: {}]
  %s4 = inlined_call_operand.vmem [shape: f32[64,1], index: 4, kind: input, shape index: {}]
  %s5 = inlined_call_operand.vmem [shape: f32[2,64,1], index: 5, kind: output, shape index: {}]
  %s6 = sld [smem:[#allocation0]]
  $region65: #{tpu_custom_call.1} parent=0
    _
  %s8 = ssub.s32 1, %s6
  %s9 = scalar_select 0, %s8, %s6
  $region1: #{tpu_custom_call.1} parent=0
    #allocation4 [shape = 'u8[327680]{0}', space=vmem, size = 0x50000, scoped, tag = 'input window, operand 0']
    #allocation5 [shape = 's32[2]{0}', space=sflag, size = 0x8, scoped, tag = 'scoped memory for tpu_custom_call.1']
    %10 = vsyncpa [#allocation5], 0
    %s11 = scalar_lea.sflag [#allocation5], 1
    %12 = vsyncpa %s11, 0
    loop: start=0, step=1, limit=4
    $region2: #{tpu_custom_call.1} parent=1 // loop_pre_header
      _
    $region3: #{tpu_custom_call.1} parent=1 // loop_header
      %s14 = sphi 0, %s18
      %p15 = scmp.ge.s32.totalorder %s14, 4
      %s21 = sphi 0, %s33
      %s22 = sphi 0, %s29
      %s23 = sphi 0, %s21
      %s24 = sphi 0, %s22
      %s25 = sphi 0, %s23
      %s26 = sphi 0, %s24
      %s38 = sphi 0, %s40
      %s41 = sphi 0, %s38
      %s42 = sphi 0, %s41
      %s58 = sphi 0, %s42
      %s62 = sphi 0, %s62
      %s64 = sphi 0, %s62
      %s65 = sphi 0, %s64
      %s79 = sphi 0, %s65
      %s83 = sphi 0, %s83
      %s85 = sphi 0, %s83
      %s86 = sphi 0, %s85
      %s100 = sphi 0, %s86
      %s104 = sphi 0, %s104
      %s106 = sphi 0, %s104
      %s107 = sphi 0, %s106
      %s121 = sphi 0, %s107
      %s125 = sphi 0, %s125
      %s127 = sphi 0, %s125
      %s128 = sphi 0, %s127
      %s142 = sphi 0, %s128
      %s148 = sphi 0, %s150
      %s151 = sphi 0, %s148
      %s152 = sphi 0, %s151
      %s168 = sphi 0, %s152
    $region4: #{tpu_custom_call.1} parent=1 // loop_header_branch
      %17 = sbr.rel (%p15) target = $region8
    $region5: #{tpu_custom_call.1} parent=1 // loop_body
      %s19 = ssub.s32 %s14, 1
      %s20 = ssub.s32 %s14, 2
      %s27 = sadd.s32 1, %s22
      %p28 = scmp.ge.s32.totalorder %s27, 1
      %s29 = scalar_select %p28, 0, %s27
      %s30 = sadd.s32 1, %s21
      %s31 = scalar_select %p28, %s30, %s21
      %p32 = scmp.ge.s32.totalorder %s31, 2
      %s33 = scalar_select %p32, 0, %s31
      %s34 = ssub.s32 %s21, %s33
      %s35 = ssub.s32 %s22, %s29
      %s36 = sor.u32 %s34, %s35
      %p37 = scmp.eq.s32.totalorder %s36, 0
      %s39 = sadd.s32 %s38, 1
      %s40 = scalar_select %p37, %s38, %s39
      %p43 = pneg %p37
      %p44 = scmp.eq.s32.totalorder %s14, 1
      %p45 = por %p43, %p44
      %p46 = scmp.ne.s32.totalorder %s38, %s41
      %p47 = scmp.eq.s32.totalorder %s14, 0
      %p48 = por %p46, %p47
      %p49 = scmp.ne.s32.totalorder %s38, %s41
      %p50 = scmp.eq.s32.totalorder %s19, 1
      %p51 = por %p49, %p50
      %p52 = scmp.ne.s32.totalorder %s41, %s42
      %p53 = scmp.eq.s32.totalorder %s19, 0
      %p54 = por %p52, %p53
      %p55 = scmp.ne.s32.totalorder %s41, %s42
      %p56 = scmp.eq.s32.totalorder %s20, 1
      %p57 = por %p55, %p56
      %p59 = scmp.ne.s32.totalorder %s42, %s58
      %p60 = scmp.eq.s32.totalorder %s20, 0
      %p61 = por %p59, %p60
      %s63 = sadd.s32 %s62, 1
      %p66 = scmp.eq.s32.totalorder %s14, 1
      %p67 = scmp.ne.s32.totalorder %s62, %s64
      %p68 = scmp.eq.s32.totalorder %s14, 0
      %p69 = por %p67, %p68
      %p70 = scmp.ne.s32.totalorder %s62, %s64
      %p71 = scmp.eq.s32.totalorder %s19, 1
      %p72 = por %p70, %p71
      %p73 = scmp.ne.s32.totalorder %s64, %s65
      %p74 = scmp.eq.s32.totalorder %s19, 0
      %p75 = por %p73, %p74
      %p76 = scmp.ne.s32.totalorder %s64, %s65
      %p77 = scmp.eq.s32.totalorder %s20, 1
      %p78 = por %p76, %p77
      %p80 = scmp.ne.s32.totalorder %s65, %s79
      %p81 = scmp.eq.s32.totalorder %s20, 0
      %p82 = por %p80, %p81
      %s84 = sadd.s32 %s83, 1
      %p87 = scmp.eq.s32.totalorder %s14, 1
      %p88 = scmp.ne.s32.totalorder %s83, %s85
      %p89 = scmp.eq.s32.totalorder %s14, 0
      %p90 = por %p88, %p89
      %p91 = scmp.ne.s32.totalorder %s83, %s85
      %p92 = scmp.eq.s32.totalorder %s19, 1
      %p93 = por %p91, %p92
      %p94 = scmp.ne.s32.totalorder %s85, %s86
      %p95 = scmp.eq.s32.totalorder %s19, 0
      %p96 = por %p94, %p95
      %p97 = scmp.ne.s32.totalorder %s85, %s86
      %p98 = scmp.eq.s32.totalorder %s20, 1
      %p99 = por %p97, %p98
      %p101 = scmp.ne.s32.totalorder %s86, %s100
      %p102 = scmp.eq.s32.totalorder %s20, 0
      %p103 = por %p101, %p102
      %s105 = sadd.s32 %s104, 1
      %p108 = scmp.eq.s32.totalorder %s14, 1
      %p109 = scmp.ne.s32.totalorder %s104, %s106
      %p110 = scmp.eq.s32.totalorder %s14, 0
      %p111 = por %p109, %p110
      %p112 = scmp.ne.s32.totalorder %s104, %s106
      %p113 = scmp.eq.s32.totalorder %s19, 1
      %p114 = por %p112, %p113
      %p115 = scmp.ne.s32.totalorder %s106, %s107
      %p116 = scmp.eq.s32.totalorder %s19, 0
      %p117 = por %p115, %p116
      %p118 = scmp.ne.s32.totalorder %s106, %s107
      %p119 = scmp.eq.s32.totalorder %s20, 1
      %p120 = por %p118, %p119
      %p122 = scmp.ne.s32.totalorder %s107, %s121
      %p123 = scmp.eq.s32.totalorder %s20, 0
      %p124 = por %p122, %p123
      %s126 = sadd.s32 %s125, 1
      %p129 = scmp.eq.s32.totalorder %s14, 1
      %p130 = scmp.ne.s32.totalorder %s125, %s127
      %p131 = scmp.eq.s32.totalorder %s14, 0
      %p132 = por %p130, %p131
      %p133 = scmp.ne.s32.totalorder %s125, %s127
      %p134 = scmp.eq.s32.totalorder %s19, 1
      %p135 = por %p133, %p134
      %p136 = scmp.ne.s32.totalorder %s127, %s128
      %p137 = scmp.eq.s32.totalorder %s19, 0
      %p138 = por %p136, %p137
      %p139 = scmp.ne.s32.totalorder %s127, %s128
      %p140 = scmp.eq.s32.totalorder %s20, 1
      %p141 = por %p139, %p140
      %p143 = scmp.ne.s32.totalorder %s128, %s142
      %p144 = scmp.eq.s32.totalorder %s20, 0
      %p145 = por %p143, %p144
      %s146 = ssub.s32 %s21, %s33
      %p147 = scmp.eq.s32.totalorder %s146, 0
      %s149 = sadd.s32 %s148, 1
      %s150 = scalar_select %p147, %s148, %s149
      %p153 = pneg %p147
      %p154 = scmp.eq.s32.totalorder %s14, 1
      %p155 = por %p153, %p154
      %p156 = scmp.ne.s32.totalorder %s148, %s151
      %p157 = scmp.eq.s32.totalorder %s14, 0
      %p158 = por %p156, %p157
      %p159 = scmp.ne.s32.totalorder %s148, %s151
      %p160 = scmp.eq.s32.totalorder %s19, 1
      %p161 = por %p159, %p160
      %p162 = scmp.ne.s32.totalorder %s151, %s152
      %p163 = scmp.eq.s32.totalorder %s19, 0
      %p164 = por %p162, %p163
      %p165 = scmp.ne.s32.totalorder %s151, %s152
      %p166 = scmp.eq.s32.totalorder %s20, 1
      %p167 = por %p165, %p166
      %p169 = scmp.ne.s32.totalorder %s152, %s168
      %p170 = scmp.eq.s32.totalorder %s20, 0
      %p171 = por %p169, %p170
      %p172 = scmp.le.s32.totalorder 1, %s14
      %p173 = scmp.lt.s32.totalorder %s14, 3
      %p174 = pnand %p172, %p173
      %p175 = pneg %p174
      // Predicated region
      $region9: #{tpu_custom_call.1} parent=5 // pred_check
        _
      $region10: #{tpu_custom_call.1} parent=5 // pred_check_branch
        %177 = sbr.rel (%p174) target = $region12
      $region11: #{tpu_custom_call.1} parent=5 // pred_region
        %s178 = ssub.s32 %s14, 1
        // Predicated region
        $region13: #{tpu_custom_call.1} parent=11 // pred_check
          %p179 = pneg %p75
        $region14: #{tpu_custom_call.1} parent=11 // pred_check_branch
          %181 = sbr.rel (%p179) target = $region16
        $region15: #{tpu_custom_call.1} parent=11 // pred_region
          _
        $region16: #{tpu_custom_call.1} parent=11 // pred_fallthru
          _
        // Predicated region
        $region17: #{tpu_custom_call.1} parent=11 // pred_check
          %p182 = pneg %p96
        $region18: #{tpu_custom_call.1} parent=11 // pred_check_branch
          %184 = sbr.rel (%p182) target = $region20
        $region19: #{tpu_custom_call.1} parent=11 // pred_region
          _
        $region20: #{tpu_custom_call.1} parent=11 // pred_fallthru
          _
        // Predicated region
        $region21: #{tpu_custom_call.1} parent=11 // pred_check
          %p185 = pneg %p117
        $region22: #{tpu_custom_call.1} parent=11 // pred_check_branch
          %187 = sbr.rel (%p185) target = $region24
        $region23: #{tpu_custom_call.1} parent=11 // pred_region
          _
        $region24: #{tpu_custom_call.1} parent=11 // pred_fallthru
          _
        // Predicated region
        $region25: #{tpu_custom_call.1} parent=11 // pred_check
          %p188 = pneg %p138
        $region26: #{tpu_custom_call.1} parent=11 // pred_check_branch
          %190 = sbr.rel (%p188) target = $region28
        $region27: #{tpu_custom_call.1} parent=11 // pred_region
          _
        $region28: #{tpu_custom_call.1} parent=11 // pred_fallthru
          _
      $region12: #{tpu_custom_call.1} parent=5 // pred_fallthru
        _
      %p191 = scmp.lt.s32.totalorder %s14, 2
      // Predicated region
      $region29: #{tpu_custom_call.1} parent=5 // pred_check
        %p192 = pneg %p191
      $region30: #{tpu_custom_call.1} parent=5 // pred_check_branch
        %194 = sbr.rel (%p192) target = $region32
      $region31: #{tpu_custom_call.1} parent=5 // pred_region
        // Predicated region
        $region33: #{tpu_custom_call.1} parent=31 // pred_check
          %p195 = pneg %p48
        $region34: #{tpu_custom_call.1} parent=31 // pred_check_branch
          %197 = sbr.rel (%p195) target = $region36
        $region35: #{tpu_custom_call.1} parent=31 // pred_region
          %s198 = sand.u32 %s38, 1
          %s199 = scalar_lea.sflag [#allocation5], %s198
          %s200 = sand.u32 %s38, 1
          %s201 = smul.addr %s200, 320
          %s202 = scalar_lea.vmem [#allocation4], %s201
          %s203 = smul.u32 5, %s22
          %s205 = ssub.s32 5120, 5120
          %206 = vsyncadd %s199, %s205
          %s207 = smul.addr %s21, 40
          %s208 = sadd.s32 %s203, %s207
          %s209 = smul.addr %s208, 128
          %s210 = scalar_lea.hbm %s0, %s209
          %s211 = sshll.u32 %s202, 4
          %s212 = int_to_ptr.vmem [resolvable:$true] %s211
          %217 = dma.hbm_to_vmem [thread:$0]  %s210, 5120, %s212, %s199, 640, 640, 40
        $region36: #{tpu_custom_call.1} parent=31 // pred_fallthru
          _
      $region32: #{tpu_custom_call.1} parent=5 // pred_fallthru
        _
      %p218 = scmp.le.s32.totalorder 1, %s14
      %p219 = scmp.lt.s32.totalorder %s14, 3
      %p220 = pnand %p218, %p219
      %p221 = pneg %p220
      // Predicated region
      $region37: #{tpu_custom_call.1} parent=5 // pred_check
        _
      $region38: #{tpu_custom_call.1} parent=5 // pred_check_branch
        %223 = sbr.rel (%p220) target = $region40
      $region39: #{tpu_custom_call.1} parent=5 // pred_region
        %s224 = ssub.s32 %s14, 1
        %s225 = sand.u32 %s41, 1
        %s226 = scalar_lea.sflag [#allocation5], %s225
        %s227 = sand.u32 %s41, 1
        %s228 = smul.addr %s227, 320
        %s229 = scalar_lea.vmem [#allocation4], %s228
        // Predicated region
        $region41: #{tpu_custom_call.1} parent=39 // pred_check
          %p230 = pneg %p54
        $region42: #{tpu_custom_call.1} parent=39 // pred_check_branch
          %232 = sbr.rel (%p230) target = $region44
        $region43: #{tpu_custom_call.1} parent=39 // pred_region
          %233 = dma.done %s226, 5120
        $region44: #{tpu_custom_call.1} parent=39 // pred_fallthru
          _
        %s234 = sand.u32 %s41, 1
        %s235 = scalar_lea.sflag [#allocation5], %s234
        %s236 = sand.u32 %s41, 1
        %s237 = smul.addr %s236, 320
        %s238 = scalar_lea.vmem [#allocation4], %s237
        %p239 = pneg %p54
        %p240 = pneg %p51
        %p241 = pneg %p75
        %p242 = pneg %p72
        %p243 = pneg %p96
        %p244 = pneg %p93
        %p245 = pneg %p117
        %p246 = pneg %p114
        %p247 = pneg %p138
        %p248 = pneg %p135
        %p249 = pneg %p164
        %p250 = pneg %p161
        %p251 = scmp.lt.s32.totalorder %s23, 1
        %s252 = scalar_select %p251, %s23, 1
        %s253 = smul.addr %s252, 8
        %s254 = smul.addr %s253, 8
        %s255 = scalar_lea.vmem %s5, %s254
        %s256 = smul.u32 5, %s24
        %p257 = scmp.lt.s32.totalorder %s23, 1
        %s258 = scalar_select %p257, %s23, 1
        %s259 = smul.addr %s258, 8
        %s260 = smul.addr %s259, 8
        %s261 = scalar_lea.vmem %s5, %s260
        %p262 = scmp.eq.s32.totalorder %s24, 0
        // Predicated region
        $region45: #{tpu_custom_call.1} parent=39 // pred_check
          %p263 = pneg %p262
        $region46: #{tpu_custom_call.1} parent=39 // pred_check_branch
          %265 = sbr.rel (%p263) target = $region48
        $region47: #{tpu_custom_call.1} parent=39 // pred_region
          %vm266 = vcmask 7168
          %267 = vst.msk [vmem:[#allocation2] sm:$0xff] %vm266, 0.0
          %268 = vst.msk [vmem:[#allocation2 + $0x8] sm:$0xff] %vm266, 0.0
          %269 = vst.msk [vmem:[#allocation2 + $0x10] sm:$0xff] %vm266, 0.0
          %270 = vst.msk [vmem:[#allocation2 + $0x18] sm:$0xff] %vm266, 0.0
          %271 = vst.msk [vmem:[#allocation2 + $0x20] sm:$0xff] %vm266, 0.0
          %272 = vst.msk [vmem:[#allocation2 + $0x28] sm:$0xff] %vm266, 0.0
          %273 = vst.msk [vmem:[#allocation2 + $0x30] sm:$0xff] %vm266, 0.0
          %274 = vst.msk [vmem:[#allocation2 + $0x38] sm:$0xff] %vm266, 0.0
          %275 = vst.msk [vmem:[#allocation3] sm:$0xff] %vm266, -inf
          %276 = vst.msk [vmem:[#allocation3 + $0x8] sm:$0xff] %vm266, -inf
          %277 = vst.msk [vmem:[#allocation3 + $0x10] sm:$0xff] %vm266, -inf
          %278 = vst.msk [vmem:[#allocation3 + $0x18] sm:$0xff] %vm266, -inf
          %279 = vst.msk [vmem:[#allocation3 + $0x20] sm:$0xff] %vm266, -inf
          %280 = vst.msk [vmem:[#allocation3 + $0x28] sm:$0xff] %vm266, -inf
          %281 = vst.msk [vmem:[#allocation3 + $0x30] sm:$0xff] %vm266, -inf
          %282 = vst.msk [vmem:[#allocation3 + $0x38] sm:$0xff] %vm266, -inf
        $region48: #{tpu_custom_call.1} parent=39 // pred_fallthru
          _
        %v283 = vld [vmem:[%s229] sm:$0xff]
        %v284 = vld [vmem:[%s229 + $0x8] sm:$0xff]
        %v285 = vld [vmem:[%s229 + $0x10] sm:$0xff]
        %v286 = vld [vmem:[%s229 + $0x18] sm:$0xff]
        %v287 = vld [vmem:[%s229 + $0x20] sm:$0xff]
        %v288 = vld [vmem:[%s229 + $0x28] sm:$0xff]
        %v289 = vld [vmem:[%s229 + $0x30] sm:$0xff]
        %v290 = vld [vmem:[%s229 + $0x38] sm:$0xff]
        %v291 = vld [vmem:[%s229 + $0x40] sm:$0xff]
        %v292 = vld [vmem:[%s229 + $0x48] sm:$0xff]
        %v293 = vld [vmem:[%s229 + $0x50] sm:$0xff]
        %v294 = vld [vmem:[%s229 + $0x58] sm:$0xff]
        %v295 = vld [vmem:[%s229 + $0x60] sm:$0xff]
        %v296 = vld [vmem:[%s229 + $0x68] sm:$0xff]
        %v297 = vld [vmem:[%s229 + $0x70] sm:$0xff]
        %v298 = vld [vmem:[%s229 + $0x78] sm:$0xff]
        %v299 = vld [vmem:[%s229 + $0x80] sm:$0xff]
        %v300 = vld [vmem:[%s229 + $0x88] sm:$0xff]
        %v301 = vld [vmem:[%s229 + $0x90] sm:$0xff]
        %v302 = vld [vmem:[%s229 + $0x98] sm:$0xff]
        %v303 = vld [vmem:[%s229 + $0xa0] sm:$0xff]
        %v304 = vld [vmem:[%s229 + $0xa8] sm:$0xff]
        %v305 = vld [vmem:[%s229 + $0xb0] sm:$0xff]
        %v306 = vld [vmem:[%s229 + $0xb8] sm:$0xff]
        %v307 = vld [vmem:[%s229 + $0xc0] sm:$0xff]
        %v308 = vld [vmem:[%s229 + $0xc8] sm:$0xff]
        %v309 = vld [vmem:[%s229 + $0xd0] sm:$0xff]
        %v310 = vld [vmem:[%s229 + $0xd8] sm:$0xff]
        %v311 = vld [vmem:[%s229 + $0xe0] sm:$0xff]
        %v312 = vld [vmem:[%s229 + $0xe8] sm:$0xff]
        %v313 = vld [vmem:[%s229 + $0xf0] sm:$0xff]
        %v314 = vld [vmem:[%s229 + $0xf8] sm:$0xff]
        %v315 = vld [vmem:[%s229 + $0x100] sm:$0xff]
        %v316 = vld [vmem:[%s229 + $0x108] sm:$0xff]
        %v317 = vld [vmem:[%s229 + $0x110] sm:$0xff]
        %v318 = vld [vmem:[%s229 + $0x118] sm:$0xff]
        %v319 = vld [vmem:[%s229 + $0x120] sm:$0xff]
        %v320 = vld [vmem:[%s229 + $0x128] sm:$0xff]
        %v321 = vld [vmem:[%s229 + $0x130] sm:$0xff]
        %v322 = vld [vmem:[%s229 + $0x138] sm:$0xff]
        %v323 = vld [vmem:[#allocation2] sm:$0xff]
        %v324 = vld [vmem:[#allocation2 + $0x8] sm:$0xff]
        %v325 = vld [vmem:[#allocation2 + $0x10] sm:$0xff]
        %v326 = vld [vmem:[#allocation2 + $0x18] sm:$0xff]
        %v327 = vld [vmem:[#allocation2 + $0x20] sm:$0xff]
        %v328 = vld [vmem:[#allocation2 + $0x28] sm:$0xff]
        %v329 = vld [vmem:[#allocation2 + $0x30] sm:$0xff]
        %v330 = vld [vmem:[#allocation2 + $0x38] sm:$0xff]
        %v331 = vadd.f32 %v283, %v284
        %v332 = vadd.f32 %v331, %v285
        %v333 = vadd.f32 %v332, %v286
        %vm334 = vcmask 523264
        %v335 = vsel %vm334, %v287, 0.0
        %v336 = vadd.f32 %v333, %v335
        %337 = vadd.xlane.f32.xlu0 %v336
        %v338 = vpop.xlane.xlu0 %337
        %v339 = vadd.f32 %v288, %v289
        %v340 = vadd.f32 %v339, %v290
        %v341 = vadd.f32 %v340, %v291
        %v342 = vsel %vm334, %v292, 0.0
        %v343 = vadd.f32 %v341, %v342
        %344 = vadd.xlane.f32.xlu0 %v343
        %v345 = vpop.xlane.xlu0 %344
        %v346 = vadd.f32 %v293, %v294
        %v347 = vadd.f32 %v346, %v295
        %v348 = vadd.f32 %v347, %v296
        %v349 = vsel %vm334, %v297, 0.0
        %v350 = vadd.f32 %v348, %v349
        %351 = vadd.xlane.f32.xlu0 %v350
        %v352 = vpop.xlane.xlu0 %351
        %v353 = vadd.f32 %v298, %v299
        %v354 = vadd.f32 %v353, %v300
        %v355 = vadd.f32 %v354, %v301
        %v356 = vsel %vm334, %v302, 0.0
        %v357 = vadd.f32 %v355, %v356
        %358 = vadd.xlane.f32.xlu0 %v357
        %v359 = vpop.xlane.xlu0 %358
        %v360 = vadd.f32 %v303, %v304
        %v361 = vadd.f32 %v360, %v305
        %v362 = vadd.f32 %v361, %v306
        %v363 = vsel %vm334, %v307, 0.0
        %v364 = vadd.f32 %v362, %v363
        %365 = vadd.xlane.f32.xlu0 %v364
        %v366 = vpop.xlane.xlu0 %365
        %v367 = vadd.f32 %v308, %v309
        %v368 = vadd.f32 %v367, %v310
        %v369 = vadd.f32 %v368, %v311
        %v370 = vsel %vm334, %v312, 0.0
        %v371 = vadd.f32 %v369, %v370
        %372 = vadd.xlane.f32.xlu0 %v371
        %v373 = vpop.xlane.xlu0 %372
        %v374 = vadd.f32 %v313, %v314
        %v375 = vadd.f32 %v374, %v315
        %v376 = vadd.f32 %v375, %v316
        %v377 = vsel %vm334, %v317, 0.0
        %v378 = vadd.f32 %v376, %v377
        %379 = vadd.xlane.f32.xlu0 %v378
        %v380 = vpop.xlane.xlu0 %379
        %v381 = vadd.f32 %v318, %v319
        %v382 = vadd.f32 %v381, %v320
        %v383 = vadd.f32 %v382, %v321
        %v384 = vsel %vm334, %v322, 0.0
        %v385 = vadd.f32 %v383, %v384
        %386 = vadd.xlane.f32.xlu0 %v385
        %v387 = vpop.xlane.xlu0 %386
        %v388 = vadd.f32 %v323, %v338
        %v389 = vadd.f32 %v324, %v345
        %v390 = vadd.f32 %v325, %v352
        %v391 = vadd.f32 %v326, %v359
        %v392 = vadd.f32 %v327, %v366
        %v393 = vadd.f32 %v328, %v373
        %v394 = vadd.f32 %v329, %v380
        %v395 = vadd.f32 %v330, %v387
        %vm396 = vcmask 7168
        %397 = vst.msk [vmem:[#allocation2] sm:$0xff] %vm396, %v388
        %398 = vst.msk [vmem:[#allocation2 + $0x8] sm:$0xff] %vm396, %v389
        %399 = vst.msk [vmem:[#allocation2 + $0x10] sm:$0xff] %vm396, %v390
        %400 = vst.msk [vmem:[#allocation2 + $0x18] sm:$0xff] %vm396, %v391
        %401 = vst.msk [vmem:[#allocation2 + $0x20] sm:$0xff] %vm396, %v392
        %402 = vst.msk [vmem:[#allocation2 + $0x28] sm:$0xff] %vm396, %v393
        %403 = vst.msk [vmem:[#allocation2 + $0x30] sm:$0xff] %vm396, %v394
        %404 = vst.msk [vmem:[#allocation2 + $0x38] sm:$0xff] %vm396, %v395
        %v405 = vld [vmem:[#allocation3] sm:$0xff]
        %v406 = vld [vmem:[#allocation3 + $0x8] sm:$0xff]
        %v407 = vld [vmem:[#allocation3 + $0x10] sm:$0xff]
        %v408 = vld [vmem:[#allocation3 + $0x18] sm:$0xff]
        %v409 = vld [vmem:[#allocation3 + $0x20] sm:$0xff]
        %v410 = vld [vmem:[#allocation3 + $0x28] sm:$0xff]
        %v411 = vld [vmem:[#allocation3 + $0x30] sm:$0xff]
        %v412 = vld [vmem:[#allocation3 + $0x38] sm:$0xff]
        %v413 = vmax.f32 %v283, %v284
        %v414 = vmax.f32 %v413, %v285
        %v415 = vmax.f32 %v414, %v286
        %v416 = vsel %vm334, %v287, -inf
        %v417 = vmax.f32 %v415, %v416
        %418 = vmax.xlane.f32.xlu0 %v417
        %v419 = vpop.xlane.xlu0 %418
        %v420 = vmax.f32 %v288, %v289
        %v421 = vmax.f32 %v420, %v290
        %v422 = vmax.f32 %v421, %v291
        %v423 = vsel %vm334, %v292, -inf
        %v424 = vmax.f32 %v422, %v423
        %425 = vmax.xlane.f32.xlu0 %v424
        %v426 = vpop.xlane.xlu0 %425
        %v427 = vmax.f32 %v293, %v294
        %v428 = vmax.f32 %v427, %v295
        %v429 = vmax.f32 %v428, %v296
        %v430 = vsel %vm334, %v297, -inf
        %v431 = vmax.f32 %v429, %v430
        %432 = vmax.xlane.f32.xlu0 %v431
        %v433 = vpop.xlane.xlu0 %432
        %v434 = vmax.f32 %v298, %v299
        %v435 = vmax.f32 %v434, %v300
        %v436 = vmax.f32 %v435, %v301
        %v437 = vsel %vm334, %v302, -inf
        %v438 = vmax.f32 %v436, %v437
        %439 = vmax.xlane.f32.xlu0 %v438
        %v440 = vpop.xlane.xlu0 %439
        %v441 = vmax.f32 %v303, %v304
        %v442 = vmax.f32 %v441, %v305
        %v443 = vmax.f32 %v442, %v306
        %v444 = vsel %vm334, %v307, -inf
        %v445 = vmax.f32 %v443, %v444
        %446 = vmax.xlane.f32.xlu0 %v445
        %v447 = vpop.xlane.xlu0 %446
        %v448 = vmax.f32 %v308, %v309
        %v449 = vmax.f32 %v448, %v310
        %v450 = vmax.f32 %v449, %v311
        %v451 = vsel %vm334, %v312, -inf
        %v452 = vmax.f32 %v450, %v451
        %453 = vmax.xlane.f32.xlu0 %v452
        %v454 = vpop.xlane.xlu0 %453
        %v455 = vmax.f32 %v313, %v314
        %v456 = vmax.f32 %v455, %v315
        %v457 = vmax.f32 %v456, %v316
        %v458 = vsel %vm334, %v317, -inf
        %v459 = vmax.f32 %v457, %v458
        %460 = vmax.xlane.f32.xlu0 %v459
        %v461 = vpop.xlane.xlu0 %460
        %v462 = vmax.f32 %v318, %v319
        %v463 = vmax.f32 %v462, %v320
        %v464 = vmax.f32 %v463, %v321
        %v465 = vsel %vm334, %v322, -inf
        %v466 = vmax.f32 %v464, %v465
        %467 = vmax.xlane.f32.xlu0 %v466
        %v468 = vpop.xlane.xlu0 %467
        %v469 = vmax.f32 %v405, %v419
        %v470 = vmax.f32 %v406, %v426
        %v471 = vmax.f32 %v407, %v433
        %v472 = vmax.f32 %v408, %v440
        %v473 = vmax.f32 %v409, %v447
        %v474 = vmax.f32 %v410, %v454
        %v475 = vmax.f32 %v411, %v461
        %v476 = vmax.f32 %v412, %v468
        %477 = vst.msk [vmem:[#allocation3] sm:$0xff] %vm396, %v469
        %478 = vst.msk [vmem:[#allocation3 + $0x8] sm:$0xff] %vm396, %v470
        %479 = vst.msk [vmem:[#allocation3 + $0x10] sm:$0xff] %vm396, %v471
        %480 = vst.msk [vmem:[#allocation3 + $0x18] sm:$0xff] %vm396, %v472
        %481 = vst.msk [vmem:[#allocation3 + $0x20] sm:$0xff] %vm396, %v473
        %482 = vst.msk [vmem:[#allocation3 + $0x28] sm:$0xff] %vm396, %v474
        %483 = vst.msk [vmem:[#allocation3 + $0x30] sm:$0xff] %vm396, %v475
        %484 = vst.msk [vmem:[#allocation3 + $0x38] sm:$0xff] %vm396, %v476
        // Predicated region
        $region49: #{tpu_custom_call.1} parent=39 // pred_check
          %p485 = pneg %p262
        $region50: #{tpu_custom_call.1} parent=39 // pred_check_branch
          %487 = sbr.rel (%p485) target = $region52
        $region51: #{tpu_custom_call.1} parent=39 // pred_region
          %v488 = vld [vmem:[#allocation2] sm:$0xff]
          %v489 = vld [vmem:[#allocation2 + $0x8] sm:$0xff]
          %v490 = vld [vmem:[#allocation2 + $0x10] sm:$0xff]
          %v491 = vld [vmem:[#allocation2 + $0x18] sm:$0xff]
          %v492 = vld [vmem:[#allocation2 + $0x20] sm:$0xff]
          %v493 = vld [vmem:[#allocation2 + $0x28] sm:$0xff]
          %v494 = vld [vmem:[#allocation2 + $0x30] sm:$0xff]
          %v495 = vld [vmem:[#allocation2 + $0x38] sm:$0xff]
          %v496 = vmul.f32 %v488, 0.0017361111
          %v497 = vmul.f32 %v489, 0.0017361111
          %v498 = vmul.f32 %v490, 0.0017361111
          %v499 = vmul.f32 %v491, 0.0017361111
          %v500 = vmul.f32 %v492, 0.0017361111
          %v501 = vmul.f32 %v493, 0.0017361111
          %v502 = vmul.f32 %v494, 0.0017361111
          %v503 = vmul.f32 %v495, 0.0017361111
          %v504 = vld [vmem:[#allocation3] sm:$0xff]
          %v505 = vld [vmem:[#allocation3 + $0x8] sm:$0xff]
          %v506 = vld [vmem:[#allocation3 + $0x10] sm:$0xff]
          %v507 = vld [vmem:[#allocation3 + $0x18] sm:$0xff]
          %v508 = vld [vmem:[#allocation3 + $0x20] sm:$0xff]
          %v509 = vld [vmem:[#allocation3 + $0x28] sm:$0xff]
          %v510 = vld [vmem:[#allocation3 + $0x30] sm:$0xff]
          %v511 = vld [vmem:[#allocation3 + $0x38] sm:$0xff]
          %v512 = vld [vmem:[%s1] sm:$0xf]
          %v513 = vld [vmem:[%s2] sm:$0xf]
          %v515 = vsel %vm334, %v512, 0
          %517 = vmatprep.subr.mxu0 0.0
          %518 = vmatpush1.msra.mxu0 %v496
          %519 = vmatprep.subr.mxu0 0.0
          %520 = vmatpush1.msra.mxu0 %v497
          %521 = vmatprep.subr.mxu0 0.0
          %522 = vmatpush1.msra.mxu0 %v498
          %523 = vmatprep.subr.mxu0 0.0
          %524 = vmatpush1.msra.mxu0 %v499
          %525 = vmatprep.subr.mxu0 0.0
          %526 = vmatpush1.msra.mxu0 %v500
          %527 = vmatprep.subr.mxu0 0.0
          %528 = vmatpush1.msra.mxu0 %v501
          %529 = vmatprep.subr.mxu0 0.0
          %530 = vmatpush1.msra.mxu0 %v502
          %531 = vmatprep.subr.mxu0 0.0
          %532 = vmatpush1.msra.mxu0 %v503
          %533 = vmatprep.subr.mxu0 0.0
          %534 = vmatpush1.msra.mxu0 0.0
          %535 = vmatprep.subr.mxu0 0.0
          %536 = vmatpush1.msra.mxu0 0.0
          %537 = vmatprep.subr.mxu0 0.0
          %538 = vmatpush1.msra.mxu0 0.0
          %539 = vmatprep.subr.mxu0 0.0
          %540 = vmatpush1.msra.mxu0 0.0
          %541 = vmatprep.subr.mxu0 0.0
          %542 = vmatpush1.msra.mxu0 0.0
          %543 = vmatprep.subr.mxu0 0.0
          %544 = vmatpush1.msra.mxu0 0.0
          %545 = vmatprep.subr.mxu0 0.0
          %546 = vmatpush1.msra.mxu0 0.0
          %547 = vmatprep.subr.mxu0 0.0
          %548 = vmatpush1.msra.mxu0 0.0
          %549 = vmatprep.subr.mxu0 0.0
          %550 = vmatpush1.msra.mxu0 0.0
          %551 = vmatprep.subr.mxu0 0.0
          %552 = vmatpush1.msra.mxu0 0.0
          %553 = vmatprep.subr.mxu0 0.0
          %554 = vmatpush1.msra.mxu0 0.0
          %555 = vmatprep.subr.mxu0 0.0
          %556 = vmatpush1.msra.mxu0 0.0
          %557 = vmatprep.subr.mxu0 0.0
          %558 = vmatpush1.msra.mxu0 0.0
          %559 = vmatprep.subr.mxu0 0.0
          %560 = vmatpush1.msra.mxu0 0.0
          %561 = vmatprep.subr.mxu0 0.0
          %562 = vmatpush1.msra.mxu0 0.0
          %563 = vmatprep.subr.mxu0 0.0
          %564 = vmatpush1.msra.mxu0 0.0
          %565 = vmatprep.subr.mxu0 0.0
          %566 = vmatpush1.msra.mxu0 0.0
          %567 = vmatprep.subr.mxu0 0.0
          %568 = vmatpush1.msra.mxu0 0.0
          %569 = vmatprep.subr.mxu0 0.0
          %570 = vmatpush1.msra.mxu0 0.0
          %571 = vmatprep.subr.mxu0 0.0
          %572 = vmatpush1.msra.mxu0 0.0
          %573 = vmatprep.subr.mxu0 0.0
          %574 = vmatpush1.msra.mxu0 0.0
          %575 = vmatprep.subr.mxu0 0.0
          %576 = vmatpush1.msra.mxu0 0.0
          %577 = vmatprep.subr.mxu0 0.0
          %578 = vmatpush1.msra.mxu0 0.0
          %579 = vmatprep.subr.mxu0 0.0
          %580 = vmatpush1.msra.mxu0 0.0
          %581 = vmatprep.mubr.f32.mxu0 0.0
          %582 = vmatmul.mubr.f32.gmra.mrb[0].mxu0 %v515
          %v583 = vpop.f32.mrb[0].mxu0
          %v584 = vadd.f32 %v513, %v583
          %v585 = vpop.f32.mrb[0].mxu0
          %586 = vdwg.mxu0
          %v587 = vmax.f32 %v584, 0.0
          %588 = vmatprep.subr.mxu0 0.0
          %589 = vmatpush1.msra.mxu0 %v504
          %590 = vmatprep.subr.mxu0 0.0
          %591 = vmatpush1.msra.mxu0 %v505
          %592 = vmatprep.subr.mxu0 0.0
          %593 = vmatpush1.msra.mxu0 %v506
          %594 = vmatprep.subr.mxu0 0.0
          %595 = vmatpush1.msra.mxu0 %v507
          %596 = vmatprep.subr.mxu0 0.0
          %597 = vmatpush1.msra.mxu0 %v508
          %598 = vmatprep.subr.mxu0 0.0
          %599 = vmatpush1.msra.mxu0 %v509
          %600 = vmatprep.subr.mxu0 0.0
          %601 = vmatpush1.msra.mxu0 %v510
          %602 = vmatprep.subr.mxu0 0.0
          %603 = vmatpush1.msra.mxu0 %v511
          %604 = vmatprep.subr.mxu0 0.0
          %605 = vmatpush1.msra.mxu0 0.0
          %606 = vmatprep.subr.mxu0 0.0
          %607 = vmatpush1.msra.mxu0 0.0
          %608 = vmatprep.subr.mxu0 0.0
          %609 = vmatpush1.msra.mxu0 0.0
          %610 = vmatprep.subr.mxu0 0.0
          %611 = vmatpush1.msra.mxu0 0.0
          %612 = vmatprep.subr.mxu0 0.0
          %613 = vmatpush1.msra.mxu0 0.0
          %614 = vmatprep.subr.mxu0 0.0
          %615 = vmatpush1.msra.mxu0 0.0
          %616 = vmatprep.subr.mxu0 0.0
          %617 = vmatpush1.msra.mxu0 0.0
          %618 = vmatprep.subr.mxu0 0.0
          %619 = vmatpush1.msra.mxu0 0.0
          %620 = vmatprep.subr.mxu0 0.0
          %621 = vmatpush1.msra.mxu0 0.0
          %622 = vmatprep.subr.mxu0 0.0
          %623 = vmatpush1.msra.mxu0 0.0
          %624 = vmatprep.subr.mxu0 0.0
          %625 = vmatpush1.msra.mxu0 0.0
          %626 = vmatprep.subr.mxu0 0.0
          %627 = vmatpush1.msra.mxu0 0.0
          %628 = vmatprep.subr.mxu0 0.0
          %629 = vmatpush1.msra.mxu0 0.0
          %630 = vmatprep.subr.mxu0 0.0
          %631 = vmatpush1.msra.mxu0 0.0
          %632 = vmatprep.subr.mxu0 0.0
          %633 = vmatpush1.msra.mxu0 0.0
          %634 = vmatprep.subr.mxu0 0.0
          %635 = vmatpush1.msra.mxu0 0.0
          %636 = vmatprep.subr.mxu0 0.0
          %637 = vmatpush1.msra.mxu0 0.0
          %638 = vmatprep.subr.mxu0 0.0
          %639 = vmatpush1.msra.mxu0 0.0
          %640 = vmatprep.subr.mxu0 0.0
          %641 = vmatpush1.msra.mxu0 0.0
          %642 = vmatprep.subr.mxu0 0.0
          %643 = vmatpush1.msra.mxu0 0.0
          %644 = vmatprep.subr.mxu0 0.0
          %645 = vmatpush1.msra.mxu0 0.0
          %646 = vmatprep.subr.mxu0 0.0
          %647 = vmatpush1.msra.mxu0 0.0
          %648 = vmatprep.subr.mxu0 0.0
          %649 = vmatpush1.msra.mxu0 0.0
          %650 = vmatprep.subr.mxu0 0.0
          %651 = vmatpush1.msra.mxu0 0.0
          %652 = vmatprep.mubr.f32.mxu0 0.0
          %653 = vmatmul.mubr.f32.gmra.mrb[0].mxu0 %v515
          %v654 = vpop.f32.mrb[0].mxu0
          %v655 = vadd.f32 %v513, %v654
          %v656 = vpop.f32.mrb[0].mxu0
          %657 = vdwg.mxu0
          %v658 = vmax.f32 %v655, 0.0
          %v659 = vld [vmem:[%s3] sm:$0xff]
          %v660 = vld [vmem:[%s3 + $0x8] sm:$0xff]
          %v661 = vld [vmem:[%s3 + $0x10] sm:$0xff]
          %v662 = vld [vmem:[%s3 + $0x18] sm:$0xff]
          %v663 = vld [vmem:[%s3 + $0x20] sm:$0xff]
          %v664 = vld [vmem:[%s3 + $0x28] sm:$0xff]
          %v665 = vld [vmem:[%s3 + $0x30] sm:$0xff]
          %v666 = vld [vmem:[%s3 + $0x38] sm:$0xff]
          %v667 = vadd.f32 %v587, %v658
          %v668 = vld [vmem:[%s4] sm:$0xff]
          %v669 = vld [vmem:[%s4 + $0x8] sm:$0xff]
          %v670 = vld [vmem:[%s4 + $0x10] sm:$0xff]
          %v671 = vld [vmem:[%s4 + $0x18] sm:$0xff]
          %v672 = vld [vmem:[%s4 + $0x20] sm:$0xff]
          %v673 = vld [vmem:[%s4 + $0x28] sm:$0xff]
          %v674 = vld [vmem:[%s4 + $0x30] sm:$0xff]
          %v675 = vld [vmem:[%s4 + $0x38] sm:$0xff]
          %v676 = vmul.f32 %v668, 2.0
          %v677 = vmul.f32 %v669, 2.0
          %v678 = vmul.f32 %v670, 2.0
          %v679 = vmul.f32 %v671, 2.0
          %v680 = vmul.f32 %v672, 2.0
          %v681 = vmul.f32 %v673, 2.0
          %v682 = vmul.f32 %v674, 2.0
          %v683 = vmul.f32 %v675, 2.0
          %vm684 = vcmask 31744
          %v686 = vsel %vm684, %v659, 0
          %v689 = vsel %vm684, %v660, 0
          %v692 = vsel %vm684, %v661, 0
          %v695 = vsel %vm684, %v662, 0
          %v698 = vsel %vm684, %v663, 0
          %v701 = vsel %vm684, %v664, 0
          %v704 = vsel %vm684, %v665, 0
          %v707 = vsel %vm684, %v666, 0
          %vm709 = vcmask 1043456
          %v711 = vsel %vm709, %v667, 0
          %713 = vmatprep.subr.mxu0 0.0
          %714 = vmatpush1.msra.mxu0 %v711
          %715 = vmatprep.subr.mxu0 0.0
          %716 = vmatpush1.msra.mxu0 0.0
          %717 = vmatprep.subr.mxu0 0.0
          %718 = vmatpush1.msra.mxu0 0.0
          %719 = vmatprep.subr.mxu0 0.0
          %720 = vmatpush1.msra.mxu0 0.0
          %721 = vmatprep.subr.mxu0 0.0
          %722 = vmatpush1.msra.mxu0 0.0
          %723 = vmatprep.subr.mxu0 0.0
          %724 = vmatpush1.msra.mxu0 0.0
          %725 = vmatprep.subr.mxu0 0.0
          %726 = vmatpush1.msra.mxu0 0.0
          %727 = vmatprep.subr.mxu0 0.0
          %728 = vmatpush1.msra.mxu0 0.0
          %729 = vmatprep.subr.mxu0 0.0
          %730 = vmatpush1.msra.mxu0 0.0
          %731 = vmatprep.subr.mxu0 0.0
          %732 = vmatpush1.msra.mxu0 0.0
          %733 = vmatprep.subr.mxu0 0.0
          %734 = vmatpush1.msra.mxu0 0.0
          %735 = vmatprep.subr.mxu0 0.0
          %736 = vmatpush1.msra.mxu0 0.0
          %737 = vmatprep.subr.mxu0 0.0
          %738 = vmatpush1.msra.mxu0 0.0
          %739 = vmatprep.subr.mxu0 0.0
          %740 = vmatpush1.msra.mxu0 0.0
          %741 = vmatprep.subr.mxu0 0.0
          %742 = vmatpush1.msra.mxu0 0.0
          %743 = vmatprep.subr.mxu0 0.0
          %744 = vmatpush1.msra.mxu0 0.0
          %745 = vmatprep.subr.mxu0 0.0
          %746 = vmatpush1.msra.mxu0 0.0
          %747 = vmatprep.subr.mxu0 0.0
          %748 = vmatpush1.msra.mxu0 0.0
          %749 = vmatprep.subr.mxu0 0.0
          %750 = vmatpush1.msra.mxu0 0.0
          %751 = vmatprep.subr.mxu0 0.0
          %752 = vmatpush1.msra.mxu0 0.0
          %753 = vmatprep.subr.mxu0 0.0
          %754 = vmatpush1.msra.mxu0 0.0
          %755 = vmatprep.subr.mxu0 0.0
          %756 = vmatpush1.msra.mxu0 0.0
          %757 = vmatprep.subr.mxu0 0.0
          %758 = vmatpush1.msra.mxu0 0.0
          %759 = vmatprep.subr.mxu0 0.0
          %760 = vmatpush1.msra.mxu0 0.0
          %761 = vmatprep.subr.mxu0 0.0
          %762 = vmatpush1.msra.mxu0 0.0
          %763 = vmatprep.subr.mxu0 0.0
          %764 = vmatpush1.msra.mxu0 0.0
          %765 = vmatprep.subr.mxu0 0.0
          %766 = vmatpush1.msra.mxu0 0.0
          %767 = vmatprep.subr.mxu0 0.0
          %768 = vmatpush1.msra.mxu0 0.0
          %769 = vmatprep.subr.mxu0 0.0
          %770 = vmatpush1.msra.mxu0 0.0
          %771 = vmatprep.subr.mxu0 0.0
          %772 = vmatpush1.msra.mxu0 0.0
          %773 = vmatprep.subr.mxu0 0.0
          %774 = vmatpush1.msra.mxu0 0.0
          %775 = vmatprep.subr.mxu0 0.0
          %776 = vmatpush1.msra.mxu0 0.0
          %777 = vmatprep.mubr.f32.mxu0 0.0
          %778 = vmatmul.mubr.f32.gmra.mrb[0].mxu0 %v686
          %v779 = vpop.f32.mrb[0].mxu0
          %v780 = vadd.f32 %v676, %v779
          %v781 = vpop.f32.mrb[0].mxu0
          %782 = vmatprep.mubr.f32.mxu0 0.0
          %783 = vmatmul.mubr.f32.gmra.mrb[0].mxu0 %v689
          %v784 = vpop.f32.mrb[0].mxu0
          %v785 = vadd.f32 %v677, %v784
          %v786 = vpop.f32.mrb[0].mxu0
          %787 = vmatprep.mubr.f32.mxu0 0.0
          %788 = vmatmul.mubr.f32.gmra.mrb[0].mxu0 %v692
          %v789 = vpop.f32.mrb[0].mxu0
          %v790 = vadd.f32 %v678, %v789
          %v791 = vpop.f32.mrb[0].mxu0
          %792 = vmatprep.mubr.f32.mxu0 0.0
          %793 = vmatmul.mubr.f32.gmra.mrb[0].mxu0 %v695
          %v794 = vpop.f32.mrb[0].mxu0
          %v795 = vadd.f32 %v679, %v794
          %v796 = vpop.f32.mrb[0].mxu0
          %797 = vmatprep.mubr.f32.mxu0 0.0
          %798 = vmatmul.mubr.f32.gmra.mrb[0].mxu0 %v698
          %v799 = vpop.f32.mrb[0].mxu0
          %v800 = vadd.f32 %v680, %v799
          %v801 = vpop.f32.mrb[0].mxu0
          %802 = vmatprep.mubr.f32.mxu0 0.0
          %803 = vmatmul.mubr.f32.gmra.mrb[0].mxu0 %v701
          %v804 = vpop.f32.mrb[0].mxu0
          %v805 = vadd.f32 %v681, %v804
          %v806 = vpop.f32.mrb[0].mxu0
          %807 = vmatprep.mubr.f32.mxu0 0.0
          %808 = vmatmul.mubr.f32.gmra.mrb[0].mxu0 %v704
          %v809 = vpop.f32.mrb[0].mxu0
          %v810 = vadd.f32 %v682, %v809
          %v811 = vpop.f32.mrb[0].mxu0
          %812 = vmatprep.mubr.f32.mxu0 0.0
          %813 = vmatmul.mubr.f32.gmra.mrb[0].mxu0 %v707
          %v814 = vpop.f32.mrb[0].mxu0
          %v815 = vadd.f32 %v683, %v814
          %v816 = vpop.f32.mrb[0].mxu0
          %817 = vdwg.mxu0
          %v818 = vsub.f32 0.0, %v780
          %v819 = vsub.f32 0.0, %v785
          %v820 = vsub.f32 0.0, %v790
          %v821 = vsub.f32 0.0, %v795
          %v822 = vsub.f32 0.0, %v800
          %v823 = vsub.f32 0.0, %v805
          %v824 = vsub.f32 0.0, %v810
          %v825 = vsub.f32 0.0, %v815
          %v826 = vmul.f32 %v818, 1.442695
          %v827 = vpow.pop %v826
          %v828 = vmul.f32 %v819, 1.442695
          %v829 = vpow.pop %v828
          %v830 = vmul.f32 %v820, 1.442695
          %v831 = vpow.pop %v830
          %v832 = vmul.f32 %v821, 1.442695
          %v833 = vpow.pop %v832
          %v834 = vmul.f32 %v822, 1.442695
          %v835 = vpow.pop %v834
          %v836 = vmul.f32 %v823, 1.442695
          %v837 = vpow.pop %v836
          %v838 = vmul.f32 %v824, 1.442695
          %v839 = vpow.pop %v838
          %v840 = vmul.f32 %v825, 1.442695
          %v841 = vpow.pop %v840
          %v842 = vadd.f32 %v827, 1.0
          %v843 = vadd.f32 %v829, 1.0
          %v844 = vadd.f32 %v831, 1.0
          %v845 = vadd.f32 %v833, 1.0
          %v846 = vadd.f32 %v835, 1.0
          %v847 = vadd.f32 %v837, 1.0
          %v848 = vadd.f32 %v839, 1.0
          %v849 = vadd.f32 %v841, 1.0
          %v850 = vrcp.pop %v842
          %v851 = vmul.f32 1.0, %v850
          %v852 = vrcp.pop %v843
          %v853 = vmul.f32 1.0, %v852
          %v854 = vrcp.pop %v844
          %v855 = vmul.f32 1.0, %v854
          %v856 = vrcp.pop %v845
          %v857 = vmul.f32 1.0, %v856
          %v858 = vrcp.pop %v846
          %v859 = vmul.f32 1.0, %v858
          %v860 = vrcp.pop %v847
          %v861 = vmul.f32 1.0, %v860
          %v862 = vrcp.pop %v848
          %v863 = vmul.f32 1.0, %v862
          %v864 = vrcp.pop %v849
          %v865 = vmul.f32 1.0, %v864
          %866 = vst.msk [vmem:[%s261] sm:$0xff] %vm396, %v851
          %867 = vst.msk [vmem:[%s261 + $0x8] sm:$0xff] %vm396, %v853
          %868 = vst.msk [vmem:[%s261 + $0x10] sm:$0xff] %vm396, %v855
          %869 = vst.msk [vmem:[%s261 + $0x18] sm:$0xff] %vm396, %v857
          %870 = vst.msk [vmem:[%s261 + $0x20] sm:$0xff] %vm396, %v859
          %871 = vst.msk [vmem:[%s261 + $0x28] sm:$0xff] %vm396, %v861
          %872 = vst.msk [vmem:[%s261 + $0x30] sm:$0xff] %vm396, %v863
          %873 = vst.msk [vmem:[%s261 + $0x38] sm:$0xff] %vm396, %v865
        $region52: #{tpu_custom_call.1} parent=39 // pred_fallthru
          _
        %p874 = scmp.lt.s32.totalorder %s23, 1
        %s875 = scalar_select %p874, %s23, 1
        %s876 = smul.addr %s875, 8
        %s877 = smul.addr %s876, 8
        %s878 = scalar_lea.vmem %s5, %s877
        // Predicated region
        $region53: #{tpu_custom_call.1} parent=39 // pred_check
          %p879 = pneg %p161
        $region54: #{tpu_custom_call.1} parent=39 // pred_check_branch
          %881 = sbr.rel (%p879) target = $region56
        $region55: #{tpu_custom_call.1} parent=39 // pred_region
          _
        $region56: #{tpu_custom_call.1} parent=39 // pred_fallthru
          _
      $region40: #{tpu_custom_call.1} parent=5 // pred_fallthru
        _
      %p882 = scmp.le.s32.totalorder 2, %s14
      // Predicated region
      $region57: #{tpu_custom_call.1} parent=5 // pred_check
        %p883 = pneg %p882
      $region58: #{tpu_custom_call.1} parent=5 // pred_check_branch
        %885 = sbr.rel (%p883) target = $region60
      $region59: #{tpu_custom_call.1} parent=5 // pred_region
        %s886 = ssub.s32 %s14, 2
        // Predicated region
        $region61: #{tpu_custom_call.1} parent=59 // pred_check
          %p887 = pneg %p167
        $region62: #{tpu_custom_call.1} parent=59 // pred_check_branch
          %889 = sbr.rel (%p887) target = $region64
        $region63: #{tpu_custom_call.1} parent=59 // pred_region
          %p890 = scmp.lt.s32.totalorder %s25, 1
          %s891 = scalar_select %p890, %s25, 1
          %s892 = smul.addr %s891, 8
          %s893 = smul.addr %s892, 8
          %s894 = scalar_lea.vmem %s5, %s893
        $region64: #{tpu_custom_call.1} parent=59 // pred_fallthru
          _
      $region60: #{tpu_custom_call.1} parent=5 // pred_fallthru
        _
    $region6: #{tpu_custom_call.1} parent=1 // loop_footer
      %s18 = sadd.s32 1, %s14
    $region7: #{tpu_custom_call.1} parent=1 // loop_footer_branch
      %13 = sbr.rel target = $region3
    $region8: #{tpu_custom_call.1} parent=1 // loop_exit
      _
    %895 = vsyncpa [#allocation5], 1
    %s896 = scalar_lea.sflag [#allocation5], 1
    %897 = vsyncpa %s896, 1

</llo_original>
